<compile_context>
chip_gen: v6e
topology: v6e:2x2x1
jax: 0.10.0
libtpu: 0.0.40
codegen_flags: <defaults>
</compile_context>

<pallas_src>
import numpy as np
import jax
import jax.numpy as jnp
from jax.experimental import pallas as pl
from jax.experimental.pallas import tpu as pltpu


def _round_up(x, m):
    return ((x + m - 1) // m) * m


# ----------------------------------------------------------------------------
# Kernel: split-first-layer MLP forward on one row tile.
# ----------------------------------------------------------------------------
def _make_mlp_kernel(n_mid):
    """relu(obs@W0_obs + zc) -> [relu(h@Wi + bi)] * n_mid -> w_last·h + b_last."""
    def kernel(obs_ref, zc_ref, w0_ref, *refs):
        out_ref = refs[-1]
        params = refs[:-1]            # (w1, b1, ..., w_last, b_last)

        # Layer 0: obs half of the split first Linear (bf16 MXU, f32 acc);
        # the latent half (zc = z @ W0_z + b0) was precomputed once.
        h = jnp.dot(obs_ref[...], w0_ref[...],
                    preferred_element_type=jnp.float32)
        h = jnp.maximum(h + zc_ref[...].astype(jnp.float32), 0.0)

        # Hidden layers (static Python unroll keeps LLO scheduler visibility).
        for li in range(n_mid):
            w = params[2 * li][...]
            b = params[2 * li + 1][...]
            h = jnp.dot(h.astype(jnp.bfloat16), w,
                        preferred_element_type=jnp.float32) + b
            h = jnp.maximum(h, 0.0)

        # Final Linear(out=1): contract the hidden dim against the (8, Hpad)
        # weight slab (row 0 real, rows 1..7 zero) -> lane-dense (8, TM).
        w_last = params[-2][...]      # (8, Hpad) bf16
        b_last = params[-1][...]      # (1, 1)    f32
        v = jax.lax.dot_general(
            w_last, h.astype(jnp.bfloat16),
            dimension_numbers=(((1,), (1,)), ((), ())),
            preferred_element_type=jnp.float32)            # (8, TM)
        out_ref[...] = v + b_last
    return kernel


# ----------------------------------------------------------------------------
# pallas_call wrapper: row-tiled grid, resident (padded) weights.
# ----------------------------------------------------------------------------
def _mlp_pallas(obs_bf, zc_bf, w0_obs, mid_params, w_last, b_last, tm):
    n_pad, obs_pad = obs_bf.shape
    h0p = zc_bf.shape[1]
    steps = n_pad // tm

    def resident(shape):
        return pl.BlockSpec(shape, lambda i: (0, 0))

    inputs = [obs_bf, zc_bf, w0_obs]
    in_specs = [
        pl.BlockSpec((tm, obs_pad), lambda i: (i, 0)),   # streamed rows
        pl.BlockSpec((tm, h0p), lambda i: (i, 0)),       # streamed latent contrib
        resident(w0_obs.shape),
    ]
    for w, b in mid_params:
        inputs += [w, b]
        in_specs += [resident(w.shape), resident(b.shape)]
    inputs += [w_last, b_last]
    in_specs += [resident(w_last.shape), resident(b_last.shape)]

    # Advisory cost estimate so XLA schedules sensibly around the custom call.
    hdims = [h0p] + [w.shape[1] for w, _ in mid_params]
    flops = 2 * n_pad * (obs_pad * hdims[0]
                         + sum(a * b for a, b in zip(hdims[:-1], hdims[1:]))
                         + hdims[-1] * 8)
    bytes_accessed = (sum(int(np.prod(x.shape)) * x.dtype.itemsize for x in inputs)
                      + 8 * steps * tm * 4)

    return pl.pallas_call(
        _make_mlp_kernel(len(mid_params)),
        out_shape=jax.ShapeDtypeStruct((8 * steps, tm), jnp.float32),
        grid=(steps,),
        in_specs=in_specs,
        out_specs=pl.BlockSpec((8, tm), lambda i: (i, 0)),
        compiler_params=pltpu.CompilerParams(
            dimension_semantics=("parallel",)),
        cost_estimate=pl.CostEstimate(flops=flops, transcendentals=0,
                                      bytes_accessed=bytes_accessed),
    )(*inputs)


# ----------------------------------------------------------------------------
# Model wrapper: parameter init + one-time padded/bf16 layout + leading dims.
# ----------------------------------------------------------------------------
class LatentVMlpModelPallas:
    def __init__(self, observation_shape, hidden_sizes, latent_size, key,
                 row_tile=512):
        assert latent_size is not None
        # TODO(synk): hidden_sizes == [] (single Linear) is not wired for the
        # split-first-layer kernel; the rlpyt default always has hidden layers.
        assert len(hidden_sizes) >= 1
        self._obs_ndim = len(observation_shape)
        self.obs_dim = int(np.prod(observation_shape))
        self.latent_size = int(latent_size)
        self.row_tile = int(row_tile)

        sizes = [self.obs_dim + self.latent_size] + list(hidden_sizes) + [1]
        # torch.nn.Linear-style uniform init (deterministic given `key`).
        self.weights, self.biases = [], []
        for i in range(len(sizes) - 1):
            fan_in, fan_out = sizes[i], sizes[i + 1]
            key, kw, kb = jax.random.split(key, 3)
            bound = 1.0 / np.sqrt(fan_in)
            self.weights.append(jax.random.uniform(
                kw, (fan_in, fan_out), jnp.float32, minval=-bound, maxval=bound))
            self.biases.append(jax.random.uniform(
                kb, (1, fan_out), jnp.float32, minval=-bound, maxval=bound))

        # ---- one-time host-side padding / layout for the kernel ----
        self.obs_pad = _round_up(self.obs_dim, 128)
        self.hp = [_round_up(h, 128) for h in hidden_sizes]

        def pad2(a, rows, cols):
            return jnp.pad(a, ((0, rows - a.shape[0]), (0, cols - a.shape[1])))

        w0, b0 = self.weights[0], self.biases[0]
        # Split first Linear into obs block (bf16) and latent block (f32).
        self.w0_obs = pad2(w0[:self.obs_dim], self.obs_pad,
                           self.hp[0]).astype(jnp.bfloat16)
        self.w0_z = pad2(w0[self.obs_dim:], self.latent_size, self.hp[0])
        self.b0 = pad2(b0, 1, self.hp[0])
        # Hidden layers 1..L-1 (bf16 weights, f32 biases).
        self.mid_params = []
        for li in range(1, len(hidden_sizes)):
            w = pad2(self.weights[li], self.hp[li - 1],
                     self.hp[li]).astype(jnp.bfloat16)
            b = pad2(self.biases[li], 1, self.hp[li])
            self.mid_params.append((w, b))
        # Final Linear(out=1): (8, Hpad) slab, only row 0 is real.
        self.w_last = pad2(self.weights[-1].T, 8, self.hp[-1]).astype(jnp.bfloat16)
        self.b_last = self.biases[-1].reshape(1, 1)

    def __call__(self, observation, prev_action, prev_reward, latent_z):
        # infer_leading_dims
        lead_dim = observation.ndim - self._obs_ndim
        assert lead_dim in (0, 1, 2)
        if lead_dim == 2:
            T, B = observation.shape[0], observation.shape[1]
        elif lead_dim == 1:
            T, B = 1, observation.shape[0]
        else:
            T, B = 1, 1
        assert B == latent_z.shape[0], (
            "Please check the batch_size of the latent space of the agent")
        N = T * B

        # Latent contribution of the first Linear, computed once (not T times).
        z = latent_z.reshape(B, -1).astype(jnp.float32)
        zc = (z @ self.w0_z + self.b0).astype(jnp.bfloat16)        # (B, H0p)
        # TODO(synk): zc is still broadcast over T via a small (T*B, H0p) bf16
        # tile; a fully in-kernel broadcast would need a row->batch gather.

        tm = min(self.row_tile, _round_up(N, 8))
        n_pad = _round_up(N, tm)

        obs = observation.reshape(N, -1).astype(jnp.bfloat16)
        obs = jnp.pad(obs, ((0, n_pad - N), (0, self.obs_pad - self.obs_dim)))
        zc = jnp.pad(jnp.tile(zc, (T, 1)), ((0, n_pad - N), (0, 0)))

        out = _mlp_pallas(obs, zc, self.w0_obs, self.mid_params,
                          self.w_last, self.b_last, tm)             # (8*G, tm)
        g = out.shape[0] // 8
        v = out.reshape(g, 8, tm)[:, 0, :].reshape(-1)[:N]

        # restore_leading_dims
        if lead_dim == 2:
            return v.reshape(T, B)
        if lead_dim == 1:
            return v.reshape(B)
        return v.reshape(())


# ----------------------------------------------------------------------------
# Pure-JAX reference mirroring the kernel math (bf16 operands, f32 accumulate).
# ----------------------------------------------------------------------------
def _reference(model, observation, latent_z):
    T, B = observation.shape[0], observation.shape[1]
    N = T * B
    obs = observation.reshape(N, -1).astype(jnp.bfloat16)
    obs = jnp.pad(obs, ((0, 0), (0, model.obs_pad - model.obs_dim)))
    z = latent_z.reshape(B, -1).astype(jnp.float32)
    zc = jnp.tile((z @ model.w0_z + model.b0).astype(jnp.bfloat16), (T, 1))
    h = jnp.dot(obs, model.w0_obs, preferred_element_type=jnp.float32)
    h = jnp.maximum(h + zc.astype(jnp.float32), 0.0)
    for w, b in model.mid_params:
        h = jnp.dot(h.astype(jnp.bfloat16), w,
                    preferred_element_type=jnp.float32) + b
        h = jnp.maximum(h, 0.0)
    v = jnp.dot(h.astype(jnp.bfloat16), model.w_last[0:1, :].T,
                preferred_element_type=jnp.float32)[:, 0] + model.b_last[0, 0]
    return v.reshape(T, B)


if __name__ == "__main__":
    key = jax.random.PRNGKey(0)
    k_obs, k_z, k_params = jax.random.split(key, 3)

    # Small shapes: T=2, B=4, observation_shape=(16,16), latent=8, hidden=[32,32]
    T, B = 2, 4
    observation_shape = (16, 16)
    latent_size = 8
    hidden_sizes = [32, 32]

    observation = jax.random.normal(k_obs, (T, B) + observation_shape, jnp.float32)
    latent_z = jax.random.normal(k_z, (B, latent_size), jnp.float32)
    prev_action = jnp.zeros((T, B), jnp.float32)   # unused by forward
    prev_reward = jnp.zeros((T, B), jnp.float32)   # unused by forward

    model = LatentVMlpModelPallas(observation_shape, hidden_sizes, latent_size,
                                  k_params)

    v = jax.block_until_ready(model(observation, prev_action, prev_reward,
                                    latent_z))
    assert v.shape == (T, B), v.shape
    v_ref = _reference(model, observation, latent_z)
    np.testing.assert_allclose(np.asarray(v), np.asarray(v_ref),
                               rtol=1e-3, atol=1e-3)

    # Exercise the multi-step, pipelined row grid (4 blocks of 8 rows).
    model.row_tile = 8
    T2, B2 = 4, 8
    obs2 = jax.random.normal(jax.random.PRNGKey(1), (T2, B2) + observation_shape,
                             jnp.float32)
    z2 = jax.random.normal(jax.random.PRNGKey(2), (B2, latent_size), jnp.float32)
    v2 = jax.block_until_ready(model(obs2, prev_action, prev_reward, z2))
    assert v2.shape == (T2, B2), v2.shape
    v2_ref = _reference(model, obs2, z2)
    np.testing.assert_allclose(np.asarray(v2), np.asarray(v2_ref),
                               rtol=1e-3, atol=1e-3)

    print("KERNEL_OK")
</pallas_src>

<mosaic_0001>
module attributes {stable_mosaic.version = 11 : i64} {
  func.func @kernel(%arg0: i32, %arg1: memref<8x256xbf16, #tpu.memory_space<vmem>>, %arg2: memref<8x128xbf16, #tpu.memory_space<vmem>>, %arg3: memref<256x128xbf16, #tpu.memory_space<vmem>>, %arg4: memref<128x128xbf16, #tpu.memory_space<vmem>>, %arg5: memref<1x128xf32, #tpu.memory_space<vmem>>, %arg6: memref<8x128xbf16, #tpu.memory_space<vmem>>, %arg7: memref<1x1xf32, #tpu.memory_space<vmem>>, %arg8: memref<8x8xf32, #tpu.memory_space<vmem>>) attributes {dimension_semantics = [#tpu.dimension_semantics<parallel>], iteration_bounds = array<i64: 1>, scalar_prefetch = 0 : i64, scratch_operands = 0 : i64, tpu.core_type = #tpu.core_type<tc>, window_params = [{transform_indices = @transform_0, window_bounds = array<i64: 8, 256>}, {transform_indices = @transform_1, window_bounds = array<i64: 8, 128>}, {pipeline_mode = #tpu.pipeline_mode<synchronous>, transform_indices = @transform_2, window_bounds = array<i64: 256, 128>}, {pipeline_mode = #tpu.pipeline_mode<synchronous>, transform_indices = @transform_3, window_bounds = array<i64: 128, 128>}, {pipeline_mode = #tpu.pipeline_mode<synchronous>, transform_indices = @transform_4, window_bounds = array<i64: 1, 128>}, {pipeline_mode = #tpu.pipeline_mode<synchronous>, transform_indices = @transform_5, window_bounds = array<i64: 8, 128>}, {pipeline_mode = #tpu.pipeline_mode<synchronous>, transform_indices = @transform_6, window_bounds = array<i64: 1, 1>}, {transform_indices = @transform_7, window_bounds = array<i64: 8, 8>}]} {
    %c0 = arith.constant 0 : index
    %c0_0 = arith.constant 0 : index
    %0 = vector.load %arg1[%c0, %c0_0] : memref<8x256xbf16, #tpu.memory_space<vmem>>, vector<8x256xbf16>
    %c0_1 = arith.constant 0 : index
    %c0_2 = arith.constant 0 : index
    %1 = vector.load %arg3[%c0_1, %c0_2] : memref<256x128xbf16, #tpu.memory_space<vmem>>, vector<256x128xbf16>
    %cst = arith.constant dense<0.000000e+00> : vector<8x128xf32>
    %2 = tpu.matmul %0, %1, %cst {dimension_numbers = #tpu.dot_dimension_numbers<[1], [0], [0], [1], [0, 0, 1, 1], [], []>} : vector<8x256xbf16>, vector<256x128xbf16>, vector<8x128xf32> -> vector<8x128xf32>
    %c0_3 = arith.constant 0 : index
    %c0_4 = arith.constant 0 : index
    %3 = vector.load %arg2[%c0_3, %c0_4] : memref<8x128xbf16, #tpu.memory_space<vmem>>, vector<8x128xbf16>
    %4 = arith.extf %3 : vector<8x128xbf16> to vector<8x128xf32>
    %5 = arith.addf %2, %4 : vector<8x128xf32>
    %cst_5 = arith.constant 0.000000e+00 : f32
    %6 = vector.broadcast %cst_5 : f32 to vector<8x128xf32>
    %7 = arith.maximumf %5, %6 : vector<8x128xf32>
    %c0_6 = arith.constant 0 : index
    %c0_7 = arith.constant 0 : index
    %8 = vector.load %arg4[%c0_6, %c0_7] : memref<128x128xbf16, #tpu.memory_space<vmem>>, vector<128x128xbf16>
    %c0_8 = arith.constant 0 : index
    %c0_9 = arith.constant 0 : index
    %9 = vector.load %arg5[%c0_8, %c0_9] : memref<1x128xf32, #tpu.memory_space<vmem>>, vector<1x128xf32>
    %10 = arith.truncf %7 : vector<8x128xf32> to vector<8x128xbf16>
    %cst_10 = arith.constant dense<0.000000e+00> : vector<8x128xf32>
    %11 = tpu.matmul %10, %8, %cst_10 {dimension_numbers = #tpu.dot_dimension_numbers<[1], [0], [0], [1], [0, 0, 1, 1], [], []>} : vector<8x128xbf16>, vector<128x128xbf16>, vector<8x128xf32> -> vector<8x128xf32>
    %12 = vector.broadcast %9 : vector<1x128xf32> to vector<8x128xf32>
    %13 = arith.addf %11, %12 : vector<8x128xf32>
    %cst_11 = arith.constant 0.000000e+00 : f32
    %14 = vector.broadcast %cst_11 : f32 to vector<8x128xf32>
    %15 = arith.maximumf %13, %14 : vector<8x128xf32>
    %c0_12 = arith.constant 0 : index
    %c0_13 = arith.constant 0 : index
    %16 = vector.load %arg6[%c0_12, %c0_13] : memref<8x128xbf16, #tpu.memory_space<vmem>>, vector<8x128xbf16>
    %c0_14 = arith.constant 0 : index
    %c0_15 = arith.constant 0 : index
    %17 = vector.load %arg7[%c0_14, %c0_15] : memref<1x1xf32, #tpu.memory_space<vmem>>, vector<1x1xf32>
    %18 = arith.truncf %15 : vector<8x128xf32> to vector<8x128xbf16>
    %cst_16 = arith.constant dense<0.000000e+00> : vector<8x8xf32>
    %19 = tpu.matmul %16, %18, %cst_16 {dimension_numbers = #tpu.dot_dimension_numbers<[1], [1], [0], [0], [0, 0, 1, 0], [], []>} : vector<8x128xbf16>, vector<8x128xbf16>, vector<8x8xf32> -> vector<8x8xf32>
    %20 = vector.broadcast %17 : vector<1x1xf32> to vector<8x8xf32>
    %21 = arith.addf %19, %20 : vector<8x8xf32>
    %c0_17 = arith.constant 0 : index
    %c0_18 = arith.constant 0 : index
    %22 = vector.load %arg8[%c0_17, %c0_18] : memref<8x8xf32, #tpu.memory_space<vmem>>, vector<8x8xf32>
    tpu.vector_store %arg8[%c0_17, %c0_18], %21 {strides = array<i32>} : memref<8x8xf32, #tpu.memory_space<vmem>>, vector<8x8xf32>,
    return
  }
  func.func @transform_0(%arg0: i32) -> (i32, i32) {
    %c0_i32 = arith.constant 0 : i32
    %c0_i32_0 = arith.constant 0 : i32
    return %arg0, %c0_i32 : i32, i32
  }
  func.func @transform_1(%arg0: i32) -> (i32, i32) {
    %c0_i32 = arith.constant 0 : i32
    %c0_i32_0 = arith.constant 0 : i32
    return %arg0, %c0_i32 : i32, i32
  }
  func.func @transform_2(%arg0: i32) -> (i32, i32) {
    %c0_i32 = arith.constant 0 : i32
    %c0_i32_0 = arith.constant 0 : i32
    %c0_i32_1 = arith.constant 0 : i32
    return %c0_i32, %c0_i32_0 : i32, i32
  }
  func.func @transform_3(%arg0: i32) -> (i32, i32) {
    %c0_i32 = arith.constant 0 : i32
    %c0_i32_0 = arith.constant 0 : i32
    %c0_i32_1 = arith.constant 0 : i32
    return %c0_i32, %c0_i32_0 : i32, i32
  }
  func.func @transform_4(%arg0: i32) -> (i32, i32) {
    %c0_i32 = arith.constant 0 : i32
    %c0_i32_0 = arith.constant 0 : i32
    %c0_i32_1 = arith.constant 0 : i32
    return %c0_i32, %c0_i32_0 : i32, i32
  }
  func.func @transform_5(%arg0: i32) -> (i32, i32) {
    %c0_i32 = arith.constant 0 : i32
    %c0_i32_0 = arith.constant 0 : i32
    %c0_i32_1 = arith.constant 0 : i32
    return %c0_i32, %c0_i32_0 : i32, i32
  }
  func.func @transform_6(%arg0: i32) -> (i32, i32) {
    %c0_i32 = arith.constant 0 : i32
    %c0_i32_0 = arith.constant 0 : i32
    %c0_i32_1 = arith.constant 0 : i32
    return %c0_i32, %c0_i32_0 : i32, i32
  }
  func.func @transform_7(%arg0: i32) -> (i32, i32) {
    %c0_i32 = arith.constant 0 : i32
    %c0_i32_0 = arith.constant 0 : i32
    return %arg0, %c0_i32 : i32, i32
  }
}

</mosaic_0001>

<llo_original>
// kernel: tpu_custom_call.1
$region0: #{tpu_custom_call.1}
  #allocation0 [shape = 'u32[]', space=smem, size = 0x4, offset = 0x4, fixed_abs, tag = 'smem constant byte address 0x4 - core index']
  #allocation1 [shape = 'u32[144,128]{1,0:T(1,128)}', space=vmem, size = 0x12000, scoped, tag = 'internal scratch']
  #allocation2 [shape = 'f32[1,1]{1,0:T(1,128)S(1)}', space=vmem, size = 0x200, scoped, tag = 'scoped memory for tpu_custom_call.1']
  %s0 = inlined_call_operand.hbm [shape: bf16[8,256], index: 0, kind: input, shape index: {}]
  %s1 = inlined_call_operand.hbm [shape: bf16[8,128], index: 1, kind: input, shape index: {}]
  %s2 = inlined_call_operand.hbm [shape: bf16[256,128], index: 2, kind: input, shape index: {}]
  %s3 = inlined_call_operand.hbm [shape: bf16[128,128], index: 3, kind: input, shape index: {}]
  %s4 = inlined_call_operand.vmem [shape: f32[1,128], index: 4, kind: input, shape index: {}]
  %s5 = inlined_call_operand.vmem [shape: bf16[8,128], index: 5, kind: input, shape index: {}]
  %s6 = inlined_call_operand.<no memory space> [shape: f32[1,1], index: 6, kind: input, shape index: {}]
  %s7 = inlined_call_operand.hbm [shape: f32[8,8], index: 7, kind: output, shape index: {}]
  %s8 = sld [smem:[#allocation0]]
  $region54: #{tpu_custom_call.1} parent=0
    _
  %s10 = ssub.s32 1, %s8
  %s11 = scalar_select 0, %s10, %s8
  %v12 = vstv %s6
  %13 = vst [vmem:[#allocation2] sm:$0x1] %v12
  $region1: #{tpu_custom_call.1} parent=0
    #allocation3 [shape = 'u8[4096]{0}', space=vmem, size = 0x1000, scoped, tag = 'input window, operand 0, single buffered']
    #allocation4 [shape = 's32[1]{0}', space=sflag, size = 0x4, scoped, tag = 'scoped memory for tpu_custom_call.1']
    #allocation5 [shape = 's32[1]{0}', space=sflag, size = 0x4, scoped, tag = 'scoped memory for tpu_custom_call.1']
    #allocation6 [shape = 'u8[2048]{0}', space=vmem, size = 0x800, scoped, tag = 'input window, operand 1, single buffered']
    #allocation7 [shape = 's32[1]{0}', space=sflag, size = 0x4, scoped, tag = 'scoped memory for tpu_custom_call.1']
    #allocation8 [shape = 'u8[65536]{0}', space=vmem, size = 0x10000, scoped, tag = 'input window, operand 2, single buffered']
    #allocation9 [shape = 'u8[32768]{0}', space=vmem, size = 0x8000, scoped, tag = 'input window, operand 3, single buffered']
    #allocation10 [shape = 's32[1]{0}', space=sflag, size = 0x4, scoped, tag = 'scoped memory for tpu_custom_call.1']
    #allocation11 [shape = 'u8[4096]{0}', space=vmem, size = 0x1000, scoped, tag = 'output window, operand 0, single buffered']
    %14 = vsyncpa [#allocation4], 0
    %15 = vsyncpa [#allocation7], 0
    %16 = vsyncpa [#allocation10], 0
    %17 = vsyncpa [#allocation5], 0
    // Predicated region
    $region2: #{tpu_custom_call.1} parent=1 // pred_check
      _
    $region3: #{tpu_custom_call.1} parent=1 // pred_check_branch
      %19 = sbr.rel (0) target = $region5
    $region4: #{tpu_custom_call.1} parent=1 // pred_region
      %s21 = ssub.s32 128, 128
      %22 = vsyncadd [#allocation4], %s21
      %s24 = sshll.u32 [#allocation3], 4
      %s25 = int_to_ptr.vmem [resolvable:$true] %s24
      %27 = dma.hbm_to_vmem [thread:$0]  %s0, 128, %s25, [#allocation4]
    $region5: #{tpu_custom_call.1} parent=1 // pred_fallthru
      _
    // Predicated region
    $region6: #{tpu_custom_call.1} parent=1 // pred_check
      _
    $region7: #{tpu_custom_call.1} parent=1 // pred_check_branch
      %29 = sbr.rel (0) target = $region9
    $region8: #{tpu_custom_call.1} parent=1 // pred_region
      %s31 = ssub.s32 64, 64
      %32 = vsyncadd [#allocation7], %s31
      %s34 = sshll.u32 [#allocation6], 4
      %s35 = int_to_ptr.vmem [resolvable:$true] %s34
      %37 = dma.hbm_to_vmem [thread:$0]  %s1, 64, %s35, [#allocation7]
    $region9: #{tpu_custom_call.1} parent=1 // pred_fallthru
      _
    // Predicated region
    $region10: #{tpu_custom_call.1} parent=1 // pred_check
      _
    $region11: #{tpu_custom_call.1} parent=1 // pred_check_branch
      %39 = sbr.rel (0) target = $region13
    $region12: #{tpu_custom_call.1} parent=1 // pred_region
      %s41 = ssub.s32 2048, 2048
      %42 = vsyncadd [#allocation7], %s41
      %s43 = sshll.u32 [#allocation8], 4
      %s44 = int_to_ptr.vmem [resolvable:$true] %s43
      %49 = dma.hbm_to_vmem [thread:$0]  %s2, 2048, %s44, [#allocation7], 64, 64, 4
    $region13: #{tpu_custom_call.1} parent=1 // pred_fallthru
      _
    // Predicated region
    $region14: #{tpu_custom_call.1} parent=1 // pred_check
      _
    $region15: #{tpu_custom_call.1} parent=1 // pred_check_branch
      %51 = sbr.rel (0) target = $region17
    $region16: #{tpu_custom_call.1} parent=1 // pred_region
      %s53 = ssub.s32 1024, 1024
      %54 = vsyncadd [#allocation10], %s53
      %s55 = sshll.u32 [#allocation9], 4
      %s56 = int_to_ptr.vmem [resolvable:$true] %s55
      %61 = dma.hbm_to_vmem [thread:$0]  %s3, 1024, %s56, [#allocation10], 64, 64, 4
    $region17: #{tpu_custom_call.1} parent=1 // pred_fallthru
      _
    // Predicated region
    $region18: #{tpu_custom_call.1} parent=1 // pred_check
      _
    $region19: #{tpu_custom_call.1} parent=1 // pred_check_branch
      %63 = sbr.rel (0) target = $region21
    $region20: #{tpu_custom_call.1} parent=1 // pred_region
      _
    $region21: #{tpu_custom_call.1} parent=1 // pred_fallthru
      _
    // Predicated region
    $region22: #{tpu_custom_call.1} parent=1 // pred_check
      _
    $region23: #{tpu_custom_call.1} parent=1 // pred_check_branch
      %65 = sbr.rel (0) target = $region25
    $region24: #{tpu_custom_call.1} parent=1 // pred_region
      _
    $region25: #{tpu_custom_call.1} parent=1 // pred_fallthru
      _
    // Predicated region
    $region26: #{tpu_custom_call.1} parent=1 // pred_check
      _
    $region27: #{tpu_custom_call.1} parent=1 // pred_check_branch
      %67 = sbr.rel (0) target = $region29
    $region28: #{tpu_custom_call.1} parent=1 // pred_region
      _
    $region29: #{tpu_custom_call.1} parent=1 // pred_fallthru
      _
    // Predicated region
    $region30: #{tpu_custom_call.1} parent=1 // pred_check
      _
    $region31: #{tpu_custom_call.1} parent=1 // pred_check_branch
      %69 = sbr.rel (0) target = $region33
    $region32: #{tpu_custom_call.1} parent=1 // pred_region
      %70 = dma.done [#allocation4], 128
    $region33: #{tpu_custom_call.1} parent=1 // pred_fallthru
      _
    // Predicated region
    $region34: #{tpu_custom_call.1} parent=1 // pred_check
      _
    $region35: #{tpu_custom_call.1} parent=1 // pred_check_branch
      %72 = sbr.rel (0) target = $region37
    $region36: #{tpu_custom_call.1} parent=1 // pred_region
      %73 = dma.done [#allocation7], 64
    $region37: #{tpu_custom_call.1} parent=1 // pred_fallthru
      _
    // Predicated region
    $region38: #{tpu_custom_call.1} parent=1 // pred_check
      _
    $region39: #{tpu_custom_call.1} parent=1 // pred_check_branch
      %75 = sbr.rel (0) target = $region41
    $region40: #{tpu_custom_call.1} parent=1 // pred_region
      %76 = dma.done [#allocation7], 2048
    $region41: #{tpu_custom_call.1} parent=1 // pred_fallthru
      _
    // Predicated region
    $region42: #{tpu_custom_call.1} parent=1 // pred_check
      _
    $region43: #{tpu_custom_call.1} parent=1 // pred_check_branch
      %78 = sbr.rel (0) target = $region45
    $region44: #{tpu_custom_call.1} parent=1 // pred_region
      %79 = dma.done [#allocation10], 1024
    $region45: #{tpu_custom_call.1} parent=1 // pred_fallthru
      _
    %v81 = vld [vmem:[#allocation3] sm:$0xff]
    %v82 = vld [vmem:[#allocation8] sm:$0xf]
    %v83 = vld [vmem:[#allocation8 + $0x4] sm:$0xf]
    %v84 = vld [vmem:[#allocation8 + $0x8] sm:$0xf]
    %v85 = vld [vmem:[#allocation8 + $0xc] sm:$0xf]
    %v86 = vld [vmem:[#allocation8 + $0x10] sm:$0xf]
    %v87 = vld [vmem:[#allocation8 + $0x14] sm:$0xf]
    %v88 = vld [vmem:[#allocation8 + $0x18] sm:$0xf]
    %v89 = vld [vmem:[#allocation8 + $0x1c] sm:$0xf]
    %v90 = vld [vmem:[#allocation8 + $0x20] sm:$0xf]
    %v91 = vld [vmem:[#allocation8 + $0x24] sm:$0xf]
    %v92 = vld [vmem:[#allocation8 + $0x28] sm:$0xf]
    %v93 = vld [vmem:[#allocation8 + $0x2c] sm:$0xf]
    %v94 = vld [vmem:[#allocation8 + $0x30] sm:$0xf]
    %v95 = vld [vmem:[#allocation8 + $0x34] sm:$0xf]
    %v96 = vld [vmem:[#allocation8 + $0x38] sm:$0xf]
    %v97 = vld [vmem:[#allocation8 + $0x3c] sm:$0xf]
    %v98 = vld [vmem:[#allocation8 + $0x40] sm:$0xf]
    %v99 = vld [vmem:[#allocation8 + $0x44] sm:$0xf]
    %v100 = vld [vmem:[#allocation8 + $0x48] sm:$0xf]
    %v101 = vld [vmem:[#allocation8 + $0x4c] sm:$0xf]
    %v102 = vld [vmem:[#allocation8 + $0x50] sm:$0xf]
    %v103 = vld [vmem:[#allocation8 + $0x54] sm:$0xf]
    %v104 = vld [vmem:[#allocation8 + $0x58] sm:$0xf]
    %v105 = vld [vmem:[#allocation8 + $0x5c] sm:$0xf]
    %v106 = vld [vmem:[#allocation8 + $0x60] sm:$0xf]
    %v107 = vld [vmem:[#allocation8 + $0x64] sm:$0xf]
    %v108 = vld [vmem:[#allocation8 + $0x68] sm:$0xf]
    %v109 = vld [vmem:[#allocation8 + $0x6c] sm:$0xf]
    %v110 = vld [vmem:[#allocation8 + $0x70] sm:$0xf]
    %v111 = vld [vmem:[#allocation8 + $0x74] sm:$0xf]
    %v112 = vld [vmem:[#allocation8 + $0x78] sm:$0xf]
    %v113 = vld [vmem:[#allocation8 + $0x7c] sm:$0xf]
    %v114 = vld [vmem:[#allocation6] sm:$0xf]
    %v115 = vunpack.c.l.bf16 %v114
    %v117 = vunpack.c.l.b16 %v81
    %v118 = vunpack.c.h.b16 %v81
    %v119 = vpack.c.b16 %v117, %v117
    %v120 = vpack.c.b16 %v118, %v118
    %v155 = vunpack.c.l.b16 %v82
    %v156 = vunpack.c.l.b16 %v83
    %v157 = vunpack.c.l.b16 %v84
    %v158 = vunpack.c.l.b16 %v85
    %v159 = vunpack.c.l.b16 %v86
    %v160 = vunpack.c.l.b16 %v87
    %v161 = vunpack.c.l.b16 %v88
    %v162 = vunpack.c.l.b16 %v89
    %v163 = vunpack.c.l.b16 %v90
    %v164 = vunpack.c.l.b16 %v91
    %v165 = vunpack.c.l.b16 %v92
    %v166 = vunpack.c.l.b16 %v93
    %v167 = vunpack.c.l.b16 %v94
    %v168 = vunpack.c.l.b16 %v95
    %v169 = vunpack.c.l.b16 %v96
    %v170 = vunpack.c.l.b16 %v97
    %v171 = vunpack.c.l.b16 %v98
    %v172 = vunpack.c.l.b16 %v99
    %v173 = vunpack.c.l.b16 %v100
    %v174 = vunpack.c.l.b16 %v101
    %v175 = vunpack.c.l.b16 %v102
    %v176 = vunpack.c.l.b16 %v103
    %v177 = vunpack.c.l.b16 %v104
    %v178 = vunpack.c.l.b16 %v105
    %v179 = vunpack.c.l.b16 %v106
    %v180 = vunpack.c.l.b16 %v107
    %v181 = vunpack.c.l.b16 %v108
    %v182 = vunpack.c.l.b16 %v109
    %v183 = vunpack.c.l.b16 %v110
    %v184 = vunpack.c.l.b16 %v111
    %v185 = vunpack.c.l.b16 %v112
    %v186 = vunpack.c.l.b16 %v113
    %v187 = vpack.c.b16 %v156, %v155
    %v188 = vpack.c.b16 %v158, %v157
    %v189 = vpack.c.b16 %v160, %v159
    %v190 = vpack.c.b16 %v162, %v161
    %v191 = vpack.c.b16 %v164, %v163
    %v192 = vpack.c.b16 %v166, %v165
    %v193 = vpack.c.b16 %v168, %v167
    %v194 = vpack.c.b16 %v170, %v169
    %v195 = vpack.c.b16 %v172, %v171
    %v196 = vpack.c.b16 %v174, %v173
    %v197 = vpack.c.b16 %v176, %v175
    %v198 = vpack.c.b16 %v178, %v177
    %v199 = vpack.c.b16 %v180, %v179
    %v200 = vpack.c.b16 %v182, %v181
    %v201 = vpack.c.b16 %v184, %v183
    %v202 = vpack.c.b16 %v186, %v185
    %219 = vmatprep.subr.bf16.mxu0 0
    %220 = vmatpush1.bf16.msra.mxu0 %v194
    %221 = vmatprep.subr.bf16.mxu0 0
    %222 = vmatpush1.bf16.msra.mxu0 %v193
    %223 = vmatprep.subr.bf16.mxu0 0
    %224 = vmatpush1.bf16.msra.mxu0 %v192
    %225 = vmatprep.subr.bf16.mxu0 0
    %226 = vmatpush1.bf16.msra.mxu0 %v191
    %227 = vmatprep.subr.bf16.mxu0 0
    %228 = vmatpush1.bf16.msra.mxu0 %v190
    %229 = vmatprep.subr.bf16.mxu0 0
    %230 = vmatpush1.bf16.msra.mxu0 %v189
    %231 = vmatprep.subr.bf16.mxu0 0
    %232 = vmatpush1.bf16.msra.mxu0 %v188
    %233 = vmatprep.subr.bf16.mxu0 0
    %234 = vmatpush1.bf16.msra.mxu0 %v187
    %235 = vmatprep.subr.bf16.mxu0 0
    %236 = vmatpush2.bf16.msra.mxu0 %v202
    %237 = vmatprep.subr.bf16.mxu0 0
    %238 = vmatpush2.bf16.msra.mxu0 %v201
    %239 = vmatprep.subr.bf16.mxu0 0
    %240 = vmatpush2.bf16.msra.mxu0 %v200
    %241 = vmatprep.subr.bf16.mxu0 0
    %242 = vmatpush2.bf16.msra.mxu0 %v199
    %243 = vmatprep.subr.bf16.mxu0 0
    %244 = vmatpush2.bf16.msra.mxu0 %v198
    %245 = vmatprep.subr.bf16.mxu0 0
    %246 = vmatpush2.bf16.msra.mxu0 %v197
    %247 = vmatprep.subr.bf16.mxu0 0
    %248 = vmatpush2.bf16.msra.mxu0 %v196
    %249 = vmatprep.subr.bf16.mxu0 0
    %250 = vmatpush2.bf16.msra.mxu0 %v195
    %251 = vmatprep.mubr.bf16.mxu0 %v120
    %252 = vmatmul.mubr.bf16.gmra.mxu0 %v119
    %v253 = vpop.f32.mrf.mxu0
    %v254 = vadd.f32 %v115, %v253
    %v255 = vpop.f32.mrf.mxu0
    %v256 = vpop.f32.mrf.mxu0
    %v257 = vpop.f32.mrf.mxu0
    %258 = vdwg.mxu0
    %v259 = vmax.f32 %v254, 0.0
    %v260 = vld [vmem:[#allocation9] sm:$0xf]
    %v261 = vld [vmem:[#allocation9 + $0x4] sm:$0xf]
    %v262 = vld [vmem:[#allocation9 + $0x8] sm:$0xf]
    %v263 = vld [vmem:[#allocation9 + $0xc] sm:$0xf]
    %v264 = vld [vmem:[#allocation9 + $0x10] sm:$0xf]
    %v265 = vld [vmem:[#allocation9 + $0x14] sm:$0xf]
    %v266 = vld [vmem:[#allocation9 + $0x18] sm:$0xf]
    %v267 = vld [vmem:[#allocation9 + $0x1c] sm:$0xf]
    %v268 = vld [vmem:[#allocation9 + $0x20] sm:$0xf]
    %v269 = vld [vmem:[#allocation9 + $0x24] sm:$0xf]
    %v270 = vld [vmem:[#allocation9 + $0x28] sm:$0xf]
    %v271 = vld [vmem:[#allocation9 + $0x2c] sm:$0xf]
    %v272 = vld [vmem:[#allocation9 + $0x30] sm:$0xf]
    %v273 = vld [vmem:[#allocation9 + $0x34] sm:$0xf]
    %v274 = vld [vmem:[#allocation9 + $0x38] sm:$0xf]
    %v275 = vld [vmem:[#allocation9 + $0x3c] sm:$0xf]
    %v276 = vld [vmem:[%s4] sm:$0x1]
    %v277 = vpack.c.bf16 %v259, %v259
    %v279 = vlaneseq
    %v280 = vshrl.u32 %v279, 7
    %v281 = vsub.s32 0, %v280
    %v282 = vrot.slane %v276, %v281
    %v300 = vunpack.c.l.b16 %v260
    %v301 = vunpack.c.l.b16 %v261
    %v302 = vunpack.c.l.b16 %v262
    %v303 = vunpack.c.l.b16 %v263
    %v304 = vunpack.c.l.b16 %v264
    %v305 = vunpack.c.l.b16 %v265
    %v306 = vunpack.c.l.b16 %v266
    %v307 = vunpack.c.l.b16 %v267
    %v308 = vunpack.c.l.b16 %v268
    %v309 = vunpack.c.l.b16 %v269
    %v310 = vunpack.c.l.b16 %v270
    %v311 = vunpack.c.l.b16 %v271
    %v312 = vunpack.c.l.b16 %v272
    %v313 = vunpack.c.l.b16 %v273
    %v314 = vunpack.c.l.b16 %v274
    %v315 = vunpack.c.l.b16 %v275
    %v316 = vpack.c.b16 %v301, %v300
    %v317 = vpack.c.b16 %v303, %v302
    %v318 = vpack.c.b16 %v305, %v304
    %v319 = vpack.c.b16 %v307, %v306
    %v320 = vpack.c.b16 %v309, %v308
    %v321 = vpack.c.b16 %v311, %v310
    %v322 = vpack.c.b16 %v313, %v312
    %v323 = vpack.c.b16 %v315, %v314
    %332 = vmatprep.subr.bf16.mxu0 0
    %333 = vmatpush1.bf16.msra.mxu0 %v323
    %334 = vmatprep.subr.bf16.mxu0 0
    %335 = vmatpush1.bf16.msra.mxu0 %v322
    %336 = vmatprep.subr.bf16.mxu0 0
    %337 = vmatpush1.bf16.msra.mxu0 %v321
    %338 = vmatprep.subr.bf16.mxu0 0
    %339 = vmatpush1.bf16.msra.mxu0 %v320
    %340 = vmatprep.subr.bf16.mxu0 0
    %341 = vmatpush1.bf16.msra.mxu0 %v319
    %342 = vmatprep.subr.bf16.mxu0 0
    %343 = vmatpush1.bf16.msra.mxu0 %v318
    %344 = vmatprep.subr.bf16.mxu0 0
    %345 = vmatpush1.bf16.msra.mxu0 %v317
    %346 = vmatprep.subr.bf16.mxu0 0
    %347 = vmatpush1.bf16.msra.mxu0 %v316
    %348 = vmatprep.subr.bf16.mxu0 0
    %349 = vmatpush2.bf16.msra.mxu0 0
    %350 = vmatprep.subr.bf16.mxu0 0
    %351 = vmatpush2.bf16.msra.mxu0 0
    %352 = vmatprep.subr.bf16.mxu0 0
    %353 = vmatpush2.bf16.msra.mxu0 0
    %354 = vmatprep.subr.bf16.mxu0 0
    %355 = vmatpush2.bf16.msra.mxu0 0
    %356 = vmatprep.subr.bf16.mxu0 0
    %357 = vmatpush2.bf16.msra.mxu0 0
    %358 = vmatprep.subr.bf16.mxu0 0
    %359 = vmatpush2.bf16.msra.mxu0 0
    %360 = vmatprep.subr.bf16.mxu0 0
    %361 = vmatpush2.bf16.msra.mxu0 0
    %362 = vmatprep.subr.bf16.mxu0 0
    %363 = vmatpush2.bf16.msra.mxu0 0
    %364 = vmatprep.mubr.bf16.mxu0 0
    %365 = vmatmul.mubr.bf16.gmra.mxu0 %v277
    %v366 = vpop.f32.mrf.mxu0
    %v367 = vadd.f32 %v282, %v366
    %v368 = vpop.f32.mrf.mxu0
    %v369 = vpop.f32.mrf.mxu0
    %v370 = vpop.f32.mrf.mxu0
    %371 = vdwg.mxu0
    %v372 = vmax.f32 %v367, 0.0
    %v373 = vld [vmem:[%s5] sm:$0xf]
    %v374 = vld [vmem:[#allocation2] sm:$0x1]
    %v375 = vpack.c.bf16 %v372, %v372
    %v377 = vlaneseq
    %v378 = vshrl.u32 %v377, 7
    %v379 = vsub.s32 0, %v378
    %v380 = vrot.slane %v374, %v379
    %381 = vset.pattern.permute.xlu0 0
    %382 = vperm.xlu0 %381, %v380
    %v383 = vpop.permute.xlu0 %382
    %385 = vmatprep.subr.bf16.mxu0 0
    %386 = vmatpush1.bf16.xpose.msra.mxu0 0
    %387 = vmatprep.subr.bf16.mxu0 0
    %388 = vmatpush1.bf16.xpose.msra.mxu0 0
    %389 = vmatprep.subr.bf16.mxu0 0
    %390 = vmatpush1.bf16.xpose.msra.mxu0 0
    %391 = vmatprep.subr.bf16.mxu0 0
    %392 = vmatpush1.bf16.xpose.msra.mxu0 0
    %393 = vmatprep.subr.bf16.mxu0 0
    %394 = vmatpush1.bf16.xpose.msra.mxu0 0
    %395 = vmatprep.subr.bf16.mxu0 0
    %396 = vmatpush1.bf16.xpose.msra.mxu0 0
    %397 = vmatprep.subr.bf16.mxu0 0
    %398 = vmatpush1.bf16.xpose.msra.mxu0 0
    %399 = vmatprep.subr.bf16.mxu0 0
    %400 = vmatpush1.bf16.xpose.msra.mxu0 %v375
    %401 = vmatprep.subr.bf16.mxu0 0
    %402 = vmatpush2.bf16.xpose.msra.mxu0 0
    %403 = vmatprep.subr.bf16.mxu0 0
    %404 = vmatpush2.bf16.xpose.msra.mxu0 0
    %405 = vmatprep.subr.bf16.mxu0 0
    %406 = vmatpush2.bf16.xpose.msra.mxu0 0
    %407 = vmatprep.subr.bf16.mxu0 0
    %408 = vmatpush2.bf16.xpose.msra.mxu0 0
    %409 = vmatprep.subr.bf16.mxu0 0
    %410 = vmatpush2.bf16.xpose.msra.mxu0 0
    %411 = vmatprep.subr.bf16.mxu0 0
    %412 = vmatpush2.bf16.xpose.msra.mxu0 0
    %413 = vmatprep.subr.bf16.mxu0 0
    %414 = vmatpush2.bf16.xpose.msra.mxu0 0
    %415 = vmatprep.subr.bf16.mxu0 0
    %416 = vmatpush2.bf16.xpose.msra.mxu0 0
    %417 = vmatprep.mubr.bf16.mxu0 0
    %418 = vmatmul.mubr.bf16.gmra.mxu0 %v373
    %v419 = vpop.f32.mrf.mxu0
    %v420 = vadd.f32 %v383, %v419
    %v421 = vpop.f32.mrf.mxu0
    %v422 = vpop.f32.mrf.mxu0
    %v423 = vpop.f32.mrf.mxu0
    %424 = vdwg.mxu0
    %vm425 = vcmask 64512
    %426 = vst.msk [vmem:[#allocation11] sm:$0xff] %vm425, %v420
    // Predicated region
    $region46: #{tpu_custom_call.1} parent=1 // pred_check
      _
    $region47: #{tpu_custom_call.1} parent=1 // pred_check_branch
      %428 = sbr.rel (0) target = $region49
    $region48: #{tpu_custom_call.1} parent=1 // pred_region
      %s430 = ssub.s32 128, 128
      %431 = vsyncadd [#allocation5], %s430
      %s433 = sshll.u32 [#allocation11], 4
      %s434 = int_to_ptr.vmem [resolvable:$true] %s433
      %436 = dma.vmem_to_hbm [thread:$0]  %s434, 128, %s7, [#allocation5]
    $region49: #{tpu_custom_call.1} parent=1 // pred_fallthru
      _
    // Predicated region
    $region50: #{tpu_custom_call.1} parent=1 // pred_check
      _
    $region51: #{tpu_custom_call.1} parent=1 // pred_check_branch
      %438 = sbr.rel (0) target = $region53
    $region52: #{tpu_custom_call.1} parent=1 // pred_region
      %439 = dma.done [#allocation5], 128
    $region53: #{tpu_custom_call.1} parent=1 // pred_fallthru
      _
    %440 = vsyncpa [#allocation4], 1
    %441 = vsyncpa [#allocation7], 1
    %442 = vsyncpa [#allocation10], 1
    %443 = vsyncpa [#allocation5], 1

</llo_original>
